<compile_context>
chip_gen: v5e
topology: v5e:2x2
jax: 0.10.0
libtpu: 0.0.40
codegen_flags: <defaults>
</compile_context>

<pallas_src>
import jax
import jax.numpy as jnp
from jax.experimental import pallas as pl
from jax.experimental.pallas import tpu as pltpu


def _make_dma_copy_kernel(n_chunks):
    """Kernel that copies `n_chunks` contiguous slabs HBM->HBM via DMA.

    All DMAs are started before any wait so they stream concurrently on the
    DMA engine; the TensorCore does no vector work at all.
    """

    def kernel(x_hbm, o_hbm, sems):
        copies = [
            pltpu.make_async_copy(x_hbm.at[j], o_hbm.at[j], sems.at[j])
            for j in range(n_chunks)
        ]
        for cp in copies:
            cp.start()
        for cp in copies:
            cp.wait()

    return kernel


def _choose_chunks(total_elems, itemsize, max_chunks=4, min_chunk_bytes=4 << 20):
    """Pick a chunk count: a few concurrent DMAs for large arrays (>=4 MiB per
    chunk so DMA issue latency is negligible), a single DMA otherwise."""
    for n in range(max_chunks, 1, -1):
        if total_elems % n == 0 and (total_elems // n) * itemsize >= min_chunk_bytes:
            return n
    return 1


def _dma_copy(flat):
    """HBM->HBM DMA identity copy of a (n_chunks, chunk_elems) array."""
    n_chunks, _ = flat.shape
    total_bytes = flat.size * jnp.dtype(flat.dtype).itemsize
    return pl.pallas_call(
        _make_dma_copy_kernel(n_chunks),
        out_shape=jax.ShapeDtypeStruct(flat.shape, flat.dtype),
        in_specs=[pl.BlockSpec(memory_space=pl.ANY)],
        out_specs=pl.BlockSpec(memory_space=pl.ANY),
        scratch_shapes=[pltpu.SemaphoreType.DMA((n_chunks,))],
        cost_estimate=pl.CostEstimate(
            flops=0, transcendentals=0, bytes_accessed=int(2 * total_bytes)
        ),
    )(flat)


class Reshape:
    """JAX/Pallas equivalent of the PyTorch Reshape module."""

    def __init__(self, *args):
        self.shape = tuple(args)

    def __call__(self, x):
        out_shape = (x.shape[0],) + self.shape

        total = x.size
        if total == 0:
            # Nothing to move; the metadata reshape is the exact result.
            return jnp.reshape(x, out_shape)

        itemsize = jnp.dtype(x.dtype).itemsize
        n_chunks = _choose_chunks(total, itemsize)

        # Metadata-only flatten into (n_chunks, chunk_elems) for the DMA copy.
        flat = jnp.reshape(x, (n_chunks, total // n_chunks))
        copied = _dma_copy(flat)
        # Metadata-only reshape to torch .view((B,) + shape) semantics.
        return jnp.reshape(copied, out_shape)


if __name__ == "__main__":
    key = jax.random.PRNGKey(0)

    # NCHW conv-style activation: (B, C, H, W) = (2, 4, 16, 16)
    x = jax.random.normal(key, (2, 4, 16, 16), dtype=jnp.float32)

    # Target shape: (16, 64) — i.e. x.view(B, 16, 64); 4*16*16 == 16*64 == 1024
    module = Reshape(16, 64)
    expected = jnp.reshape(x, (x.shape[0], 16, 64))

    y = jax.block_until_ready(module(x))
    assert y.shape == (2, 16, 64), y.shape
    assert y.dtype == x.dtype
    assert bool(jnp.array_equal(y, expected))

    # Second small check: dtype-independence (no vreg-density requirement on
    # the DMA path). (B, S, D) = (2, 8, 32) bf16 -> (2, 32, 8).
    x2 = jax.random.normal(jax.random.PRNGKey(1), (2, 8, 32)).astype(jnp.bfloat16)
    y2 = jax.block_until_ready(Reshape(32, 8)(x2))
    assert y2.shape == (2, 32, 8), y2.shape
    assert y2.dtype == x2.dtype
    assert bool(jnp.array_equal(y2, jnp.reshape(x2, (2, 32, 8))))

    print("KERNEL_OK")
</pallas_src>

<mosaic_0001>
module attributes {stable_mosaic.version = 11 : i64} {
  func.func @kernel(%arg0: memref<1x2048xf32, #tpu.memory_space<any>>, %arg1: memref<1x2048xf32, #tpu.memory_space<any>>, %arg2: memref<1x!tpu.dma_semaphore, #tpu.memory_space<semaphore_mem>>) attributes {dimension_semantics = [], scalar_prefetch = 0 : i64, scratch_operands = 1 : i64, tpu.core_type = #tpu.core_type<tc>} {
    %c0_i32 = arith.constant 0 : i32
    %c0_i32_0 = arith.constant 0 : i32
    %c0_i32_1 = arith.constant 0 : i32
    %c0_i32_2 = arith.constant 0 : i32
    %0 = tpu.memref_slice %arg0[%c0_i32, %c0_i32_2] : memref<1x2048xf32, #tpu.memory_space<any>> -> memref<1x2048xf32, #tpu.memory_space<any>>
    %1 = tpu.memref_squeeze %0 : memref<1x2048xf32, #tpu.memory_space<any>> -> memref<2048xf32, #tpu.memory_space<any>>
    %c0_i32_3 = arith.constant 0 : i32
    %2 = tpu.memref_slice %arg1[%c0_i32_0, %c0_i32_3] : memref<1x2048xf32, #tpu.memory_space<any>> -> memref<1x2048xf32, #tpu.memory_space<any>>
    %3 = tpu.memref_squeeze %2 : memref<1x2048xf32, #tpu.memory_space<any>> -> memref<2048xf32, #tpu.memory_space<any>>
    %4 = tpu.memref_slice %arg2[%c0_i32_1] : memref<1x!tpu.dma_semaphore, #tpu.memory_space<semaphore_mem>> -> memref<1x!tpu.dma_semaphore, #tpu.memory_space<semaphore_mem>>
    %5 = tpu.memref_squeeze %4 : memref<1x!tpu.dma_semaphore, #tpu.memory_space<semaphore_mem>> -> memref<!tpu.dma_semaphore, #tpu.memory_space<semaphore_mem>>
    tpu.enqueue_dma source(%1 : memref<2048xf32, #tpu.memory_space<any>>) target(%3 : memref<2048xf32, #tpu.memory_space<any>>) target_semaphore(%5 : memref<!tpu.dma_semaphore, #tpu.memory_space<semaphore_mem>>)
    %c0_i32_4 = arith.constant 0 : i32
    %c0_i32_5 = arith.constant 0 : i32
    %c0_i32_6 = arith.constant 0 : i32
    %c0_i32_7 = arith.constant 0 : i32
    %6 = tpu.memref_slice %arg0[%c0_i32_4, %c0_i32_7] : memref<1x2048xf32, #tpu.memory_space<any>> -> memref<1x2048xf32, #tpu.memory_space<any>>
    %7 = tpu.memref_squeeze %6 : memref<1x2048xf32, #tpu.memory_space<any>> -> memref<2048xf32, #tpu.memory_space<any>>
    %c0_i32_8 = arith.constant 0 : i32
    %8 = tpu.memref_slice %arg1[%c0_i32_5, %c0_i32_8] : memref<1x2048xf32, #tpu.memory_space<any>> -> memref<1x2048xf32, #tpu.memory_space<any>>
    %9 = tpu.memref_squeeze %8 : memref<1x2048xf32, #tpu.memory_space<any>> -> memref<2048xf32, #tpu.memory_space<any>>
    %10 = tpu.memref_slice %arg2[%c0_i32_6] : memref<1x!tpu.dma_semaphore, #tpu.memory_space<semaphore_mem>> -> memref<1x!tpu.dma_semaphore, #tpu.memory_space<semaphore_mem>>
    %11 = tpu.memref_squeeze %10 : memref<1x!tpu.dma_semaphore, #tpu.memory_space<semaphore_mem>> -> memref<!tpu.dma_semaphore, #tpu.memory_space<semaphore_mem>>
    tpu.wait_dma2 semaphore(%11 : memref<!tpu.dma_semaphore, #tpu.memory_space<semaphore_mem>>) src(%7 : memref<2048xf32, #tpu.memory_space<any>>) dst(%9 : memref<2048xf32, #tpu.memory_space<any>>)
    return
  }
}

</mosaic_0001>

<llo_original>
// kernel: tpu_custom_call.1
$region0: #{tpu_custom_call.1}
  #allocation0 [shape = 'u32[]', space=smem, size = 0x4, offset = 0x4, fixed_abs, tag = 'smem constant byte address 0x4 - core index']
  #allocation1 [shape = 'u32[72,128]{1,0:T(1,128)}', space=vmem, size = 0x9000, scoped, tag = 'internal scratch']
  #allocation2 [shape = 's32[1]{0}', space=sflag, size = 0x4, scoped, tag = 'scratch operand']
  #allocation3 [shape = 's32[]', space=sflag, size = 0x4, offset = 0, fixed_abs, tag = 'sflag constant byte address 0x0 - dummy sync flag']
  #allocation4 [shape = 'u32[0]{0}', space=smem, size = 0, offset = 0, fixed_abs, tag = 'smem constant byte address 0x0 - null']
  %s0 = inlined_call_operand.hbm [shape: f32[1,2048], index: 0, kind: input, shape index: {}]
  %s1 = inlined_call_operand.hbm [shape: f32[1,2048], index: 1, kind: output, shape index: {}]
  %s2 = sld [smem:[#allocation0]]
  $region2: #{tpu_custom_call.1} parent=0
    _
  %s4 = ssub.s32 1, %s2
  %s5 = scalar_select 0, %s4, %s2
  %s7 = sshll.u32 1, 14
  %s8 = sxor.u32 4294967295, %s7
  %s10 = sshll.u32 %s0, 4
  %s11 = int_to_ptr.hbm [resolvable:$true] %s10
  %s12 = sshll.u32 %s1, 4
  %s13 = int_to_ptr.hbm [resolvable:$true] %s12
  %16 = dma.general %s11, 256, %s13, [#allocation2], [#allocation3], [#allocation4], 0, 0
  %18 = dma.done [#allocation2], 256
  %19 = vsyncmov [#allocation2]
  %s20 = vpop.sfrf %19
  %p21 = scmp.eq.s32.totalorder %s20, 0
  %p22 = pneg %p21
  %24 = shalt.err (%p22)

</llo_original>
